<compile_context>
chip_gen: v7x
topology: tpu7x:2x2x1
jax: 0.10.0
libtpu: 0.0.40
codegen_flags: <defaults>
</compile_context>

<pallas_src>
import jax
import jax.numpy as jnp
import numpy as np
from jax.experimental import pallas as pl
from jax.experimental.pallas import tpu as pltpu  # noqa: F401  (kept for TPU backend)

# ---- config (stands in for `args`) -----------------------------------------
DIM_X, DIM_Y = 2, 1
DIM_H_LAT, NUM_H_LAT = 32, 2          # Context_Encoder: 1 + NUM_H_LAT linears
DIM_LAT = 16
NUM_LAT = 2                           # number of experts
DIM_H, NUM_H = 32, 2                  # dec_net: 1 + NUM_H + 1 linears
AMORT_Y = True                        # decoder outputs 2*dim_y (mean/std)


def _relu(x):
    return jnp.maximum(x, 0.0)


def _rup8(n):
    return ((n + 7) // 8) * 8


# ---- host-side parameter packing (done once) ---------------------------------
def pack_params(params, B, Nc, Npred):
    """Pack all weights/biases (expert-folded / block-diagonal) + avg/sel into
    one (R, W) float32 slab.  Returns (jnp slab, offsets dict, width)."""
    E, L, Hl, H, dy = NUM_LAT, DIM_LAT, DIM_H_LAT, DIM_H, DIM_Y

    def pn(a):
        return np.asarray(jax.device_get(a), np.float32)

    pieces = []

    # encoder first layer: shared input -> per-expert weights concatenated along N
    pieces.append(("enc_w0", np.concatenate([pn(params["enc_w0"][e]) for e in range(E)], axis=1)))
    pieces.append(("enc_b0", np.concatenate([pn(params["enc_b0"][e]) for e in range(E)], axis=1)))
    # encoder hidden layers: block-diagonal across experts
    for l in range(NUM_H_LAT):
        w = np.zeros((E * Hl, E * Hl), np.float32)
        for e in range(E):
            w[e * Hl:(e + 1) * Hl, e * Hl:(e + 1) * Hl] = pn(params["enc_wh"][e, l])
        pieces.append((f"enc_wh{l}", w))
        pieces.append((f"enc_bh{l}",
                       np.concatenate([pn(params["enc_bh"][e, l]) for e in range(E)], axis=1)))
    # mu/logvar projection: columns ordered [mu_0..mu_{E-1} | lv_0..lv_{E-1}]
    wml = np.zeros((E * Hl, 2 * E * L), np.float32)
    bml = np.zeros((1, 2 * E * L), np.float32)
    for e in range(E):
        wfull, bfull = pn(params["enc_wml"][e]), pn(params["enc_bml"][e])
        wml[e * Hl:(e + 1) * Hl, e * L:(e + 1) * L] = wfull[:, :L]
        wml[e * Hl:(e + 1) * Hl, E * L + e * L:E * L + (e + 1) * L] = wfull[:, L:]
        bml[0, e * L:(e + 1) * L] = bfull[0, :L]
        bml[0, E * L + e * L:E * L + (e + 1) * L] = bfull[0, L:]
    pieces.append(("enc_wml", wml))
    pieces.append(("enc_bml", bml))

    # decoder (shared weights, replicated / block-diag so one matmul serves all experts)
    dw0, db0 = pn(params["dec_w0"]), pn(params["dec_b0"])
    pieces.append(("dec_w0x", np.concatenate([dw0[:DIM_X, :]] * E, axis=1)))          # (dim_x, E*H)
    dw0z = np.zeros((E * L, E * H), np.float32)
    for e in range(E):
        dw0z[e * L:(e + 1) * L, e * H:(e + 1) * H] = dw0[DIM_X:, :]
    pieces.append(("dec_w0z", dw0z))
    pieces.append(("dec_b0", np.concatenate([db0] * E, axis=1)))
    for l in range(NUM_H):
        w = np.zeros((E * H, E * H), np.float32)
        for e in range(E):
            w[e * H:(e + 1) * H, e * H:(e + 1) * H] = pn(params["dec_wh"][l])
        pieces.append((f"dec_wh{l}", w))
        pieces.append((f"dec_bh{l}", np.concatenate([pn(params["dec_bh"][l])] * E, axis=1)))
    # decoder output: columns ordered [mean_0..mean_{E-1} | std_0..std_{E-1}]
    dwo, dbo = pn(params["dec_wo"]), pn(params["dec_bo"])
    wo = np.zeros((E * H, 2 * E * dy), np.float32)
    bo = np.zeros((1, 2 * E * dy), np.float32)
    for e in range(E):
        wo[e * H:(e + 1) * H, e * dy:(e + 1) * dy] = dwo[:, :dy]
        wo[e * H:(e + 1) * H, E * dy + e * dy:E * dy + (e + 1) * dy] = dwo[:, dy:]
        bo[0, e * dy:(e + 1) * dy] = dbo[0, :dy]
        bo[0, E * dy + e * dy:E * dy + (e + 1) * dy] = dbo[0, dy:]
    pieces.append(("dec_wo", wo))
    pieces.append(("dec_bo", bo))

    # per-batch context-mean and z-broadcast operators (shape-only constants)
    pieces.append(("avg", np.repeat(np.eye(B, dtype=np.float32), Nc, axis=1) / float(Nc)))
    pieces.append(("sel", np.repeat(np.eye(B, dtype=np.float32), Npred, axis=0)))

    width = max(a.shape[1] for _, a in pieces)
    rows, offs, row = [], {}, 0
    for name, a in pieces:
        nr8 = _rup8(a.shape[0])
        buf = np.zeros((nr8, width), np.float32)
        buf[:a.shape[0], :a.shape[1]] = a
        rows.append(buf)
        offs[name] = (row, a.shape[0], a.shape[1])
        row += nr8
    slab = np.concatenate(rows, axis=0)           # one DMA, ~130 KB
    return jnp.asarray(slab), offs, width


# ---- fused Pallas kernel -----------------------------------------------------
def make_fused_kernel(offs, B, Nc, Npred):
    E, L, dy = NUM_LAT, DIM_LAT, DIM_Y
    BNc, BP = B * Nc, B * Npred
    Din = DIM_X + DIM_Y

    def kernel(par_ref, dat_ref, mulv_out, y_out):
        f32 = jnp.float32

        def P(name):                               # static slab view -> load
            r0, nr, nc = offs[name]
            return par_ref[r0:r0 + nr, 0:nc]

        memo = dat_ref[0:BNc, 0:Din]               # (B*Nc, dim_x+dim_y)
        xp = dat_ref[BNc:BNc + BP, 0:DIM_X]        # (B*Npred, dim_x)
        eps = dat_ref[BNc + BP:BNc + BP + B, 0:E * L]   # (B, E*L)
        avg = P("avg")                             # (B, B*Nc)
        sel = P("sel")                             # (B*Npred, B)

        # decoder x-projection (independent of encoder -> free overlap)
        xproj = jnp.dot(xp, P("dec_w0x"), preferred_element_type=f32)     # (BP, E*H)

        # ---- all-expert context encoder (experts folded into lanes) ----
        h = _relu(jnp.dot(memo, P("enc_w0"), preferred_element_type=f32) + P("enc_b0"))
        for l in range(NUM_H_LAT):
            h = _relu(jnp.dot(h, P(f"enc_wh{l}"), preferred_element_type=f32)
                      + P(f"enc_bh{l}"))
        h_agg = jnp.dot(avg, h, preferred_element_type=f32)               # (B, E*Hl)
        ml = jnp.dot(h_agg, P("enc_wml"), preferred_element_type=f32) + P("enc_bml")
        mulv_out[...] = ml                                                # [mu | lv], one store

        # ---- reparameterization in VMEM ----
        mu = ml[:, :E * L]
        lv = ml[:, E * L:]
        z = mu + eps * jnp.exp(0.5 * lv)                                  # (B, E*L)

        # ---- all-expert decoder (block-diagonal weights) ----
        zproj = jnp.dot(z, P("dec_w0z"), preferred_element_type=f32)      # (B, E*H)
        d = _relu(xproj + jnp.dot(sel, zproj, preferred_element_type=f32) + P("dec_b0"))
        for l in range(NUM_H):
            d = _relu(jnp.dot(d, P(f"dec_wh{l}"), preferred_element_type=f32)
                      + P(f"dec_bh{l}"))
        out = jnp.dot(d, P("dec_wo"), preferred_element_type=f32) + P("dec_bo")   # (BP, 2*E*dy)
        col = jax.lax.broadcasted_iota(jnp.int32, out.shape, 1)
        y_out[...] = jnp.where(col < E * dy,
                               jax.nn.sigmoid(out), jax.nn.softplus(out))  # one store

    return kernel


# ---- wrapper -----------------------------------------------------------------
def np_fused_call(slab, offs, x_c, y_c, x_pred, eps):
    B, Nc, _ = x_c.shape
    Npred = x_pred.shape[1]
    E, L, dy = NUM_LAT, DIM_LAT, DIM_Y
    BNc, BP = B * Nc, B * Npred
    W = max(E * L, DIM_X + DIM_Y)      # data-slab lane width

    def pad_cols(a):
        return jnp.pad(a, ((0, 0), (0, W - a.shape[1])))

    memo = jnp.concatenate([x_c.reshape(BNc, DIM_X), y_c.reshape(BNc, DIM_Y)], axis=-1)
    xp = x_pred.reshape(BP, DIM_X)
    eps2 = jnp.transpose(eps, (1, 0, 2)).reshape(B, E * L)
    data = jnp.concatenate([pad_cols(memo), pad_cols(xp), pad_cols(eps2)],
                           axis=0).astype(jnp.float32)                     # one DMA

    kernel = make_fused_kernel(offs, B, Nc, Npred)
    mulv, yout = pl.pallas_call(
        kernel,
        out_shape=(jax.ShapeDtypeStruct((B, 2 * E * L), jnp.float32),
                   jax.ShapeDtypeStruct((BP, 2 * E * dy), jnp.float32)),
    )(slab, data)

    mu_c = mulv[:, :E * L].reshape(B, E, L)
    logvar_c = mulv[:, E * L:].reshape(B, E, L)
    y_mean = yout[:, :E * dy].reshape(B, Npred, E, dy)
    y_std = yout[:, E * dy:].reshape(B, Npred, E, dy)
    return mu_c, logvar_c, y_mean, y_std


def np_forward(slab, offs, x_c, y_c, x_t, y_t, x_pred, eps_key):
    """Eval-mode MoE_NP.forward (whether_image=True, amort_y=True)."""
    del x_t, y_t  # target set unused in eval-mode encoder
    B = x_c.shape[0]
    eps = jax.random.normal(eps_key, (NUM_LAT, B, DIM_LAT), jnp.float32)
    mu_c, logvar_c, y_mean, y_std = np_fused_call(slab, offs, x_c, y_c, x_pred, eps)
    mu_t, logvar_t = 0.0, 0.0  # torch eval branch returns (0, 0)
    return mu_c, logvar_c, mu_t, logvar_t, y_mean, y_std


# ---- pure-JAX reference for correctness check --------------------------------
def _ref_forward(params, x_c, y_c, x_pred, eps):
    B, Nc, _ = x_c.shape
    Npred = x_pred.shape[1]
    memo = jnp.concatenate([x_c, y_c], axis=-1)
    mus, lvs, means, stds = [], [], [], []
    for e in range(NUM_LAT):
        h = _relu(memo @ params["enc_w0"][e] + params["enc_b0"][e])
        for l in range(NUM_H_LAT):
            h = _relu(h @ params["enc_wh"][e, l] + params["enc_bh"][e, l])
        h_agg = jnp.mean(h, axis=1)
        ml = h_agg @ params["enc_wml"][e] + params["enc_bml"][e][0]
        mu_e, lv_e = ml[:, :DIM_LAT], ml[:, DIM_LAT:]
        z_e = mu_e + eps[e] * jnp.exp(0.5 * lv_e)
        z_rows = jnp.broadcast_to(z_e[:, None, :], (B, Npred, DIM_LAT))
        d = jnp.concatenate([x_pred, z_rows], axis=-1)
        d = _relu(d @ params["dec_w0"] + params["dec_b0"])
        for l in range(NUM_H):
            d = _relu(d @ params["dec_wh"][l] + params["dec_bh"][l])
        out = d @ params["dec_wo"] + params["dec_bo"]
        mus.append(mu_e)
        lvs.append(lv_e)
        means.append(jax.nn.sigmoid(out[..., :DIM_Y]))
        stds.append(jax.nn.softplus(out[..., DIM_Y:]))
    return (jnp.stack(mus, axis=1), jnp.stack(lvs, axis=1),
            jnp.stack(means, axis=2), jnp.stack(stds, axis=2))


# ---- deterministic parameter init (torch nn.Linear style) ---------------------
def linear_init(key, fan_in, fan_out):
    kw, kb = jax.random.split(key)
    bound = 1.0 / float(fan_in) ** 0.5
    w = jax.random.uniform(kw, (fan_in, fan_out), jnp.float32, -bound, bound)
    b = jax.random.uniform(kb, (1, fan_out), jnp.float32, -bound, bound)
    return w, b


def init_params(key):
    keys = jax.random.split(key, 64)
    ki = iter(range(64))
    params = {}
    Din = DIM_X + DIM_Y
    ew0, eb0, ewh, ebh, ewml, ebml = [], [], [], [], [], []
    for _ in range(NUM_LAT):
        w0, b0 = linear_init(keys[next(ki)], Din, DIM_H_LAT)
        wh_l, bh_l = [], []
        for _ in range(NUM_H_LAT):
            w, b = linear_init(keys[next(ki)], DIM_H_LAT, DIM_H_LAT)
            wh_l.append(w)
            bh_l.append(b)
        wmu, bmu = linear_init(keys[next(ki)], DIM_H_LAT, DIM_LAT)
        wlv, blv = linear_init(keys[next(ki)], DIM_H_LAT, DIM_LAT)
        ew0.append(w0)
        eb0.append(b0)
        ewh.append(jnp.stack(wh_l))
        ebh.append(jnp.stack(bh_l))
        ewml.append(jnp.concatenate([wmu, wlv], axis=-1))
        ebml.append(jnp.concatenate([bmu, blv], axis=-1))
    params["enc_w0"] = jnp.stack(ew0)     # (E, Din, Hl)
    params["enc_b0"] = jnp.stack(eb0)     # (E, 1, Hl)
    params["enc_wh"] = jnp.stack(ewh)     # (E, NUM_H_LAT, Hl, Hl)
    params["enc_bh"] = jnp.stack(ebh)     # (E, NUM_H_LAT, 1, Hl)
    params["enc_wml"] = jnp.stack(ewml)   # (E, Hl, 2L)
    params["enc_bml"] = jnp.stack(ebml)   # (E, 1, 2L)

    params["dec_w0"], params["dec_b0"] = linear_init(keys[next(ki)],
                                                     DIM_X + DIM_LAT, DIM_H)
    dwh, dbh = [], []
    for _ in range(NUM_H):
        w, b = linear_init(keys[next(ki)], DIM_H, DIM_H)
        dwh.append(w)
        dbh.append(b)
    params["dec_wh"] = jnp.stack(dwh)     # (NUM_H, H, H)
    params["dec_bh"] = jnp.stack(dbh)     # (NUM_H, 1, H)
    out_dim = 2 * DIM_Y if AMORT_Y else DIM_Y
    params["dec_wo"], params["dec_bo"] = linear_init(keys[next(ki)], DIM_H, out_dim)
    return params


if __name__ == "__main__":
    key = jax.random.PRNGKey(0)
    k_data, k_param, k_eps = jax.random.split(key, 3)
    dkeys = jax.random.split(k_data, 5)

    B, Nc, Npred = 2, 8, 8
    x_c = jax.random.normal(dkeys[0], (B, Nc, DIM_X), jnp.float32)
    y_c = jax.random.normal(dkeys[1], (B, Nc, DIM_Y), jnp.float32)
    x_t = jax.random.normal(dkeys[2], (B, Nc, DIM_X), jnp.float32)  # unused (eval)
    y_t = jax.random.normal(dkeys[3], (B, Nc, DIM_Y), jnp.float32)  # unused (eval)
    x_pred = jax.random.normal(dkeys[4], (B, Npred, DIM_X), jnp.float32)

    params = init_params(k_param)
    slab, offs, _ = pack_params(params, B, Nc, Npred)   # one packed constant slab

    mu_c, logvar_c, mu_t, logvar_t, y_mean, y_std = jax.block_until_ready(
        np_forward(slab, offs, x_c, y_c, x_t, y_t, x_pred, k_eps)
    )

    # sanity check against a pure-JAX reference (same eps)
    eps = jax.random.normal(k_eps, (NUM_LAT, B, DIM_LAT), jnp.float32)
    r_mu, r_lv, r_mean, r_std = _ref_forward(params, x_c, y_c, x_pred, eps)
    np.testing.assert_allclose(np.asarray(mu_c), np.asarray(r_mu), rtol=1e-5, atol=1e-5)
    np.testing.assert_allclose(np.asarray(logvar_c), np.asarray(r_lv), rtol=1e-5, atol=1e-5)
    np.testing.assert_allclose(np.asarray(y_mean), np.asarray(r_mean), rtol=1e-5, atol=1e-5)
    np.testing.assert_allclose(np.asarray(y_std), np.asarray(r_std), rtol=1e-5, atol=1e-5)

    print("KERNEL_OK")
</pallas_src>

<mosaic_0001>
module attributes {stable_mosaic.version = 11 : i64} {
  func.func @kernel(%arg0: memref<520x64xf32, #tpu.memory_space<vmem>>, %arg1: memref<34x32xf32, #tpu.memory_space<vmem>>, %arg2: memref<2x64xf32, #tpu.memory_space<vmem>>, %arg3: memref<16x4xf32, #tpu.memory_space<vmem>>) attributes {dimension_semantics = [], scalar_prefetch = 0 : i64, scratch_operands = 0 : i64, tpu.core_type = #tpu.core_type<tc>} {
    %c0 = arith.constant 0 : index
    %c0_0 = arith.constant 0 : index
    %0 = vector.load %arg1[%c0, %c0_0] : memref<34x32xf32, #tpu.memory_space<vmem>>, vector<16x3xf32>
    %c16 = arith.constant 16 : index
    %c0_1 = arith.constant 0 : index
    %1 = vector.load %arg1[%c16, %c0_1] : memref<34x32xf32, #tpu.memory_space<vmem>>, vector<16x2xf32>
    %c32 = arith.constant 32 : index
    %c0_2 = arith.constant 0 : index
    %2 = vector.load %arg1[%c32, %c0_2] : memref<34x32xf32, #tpu.memory_space<vmem>>, vector<2x32xf32>
    %c496 = arith.constant 496 : index
    %c0_3 = arith.constant 0 : index
    %3 = vector.load %arg0[%c496, %c0_3] : memref<520x64xf32, #tpu.memory_space<vmem>>, vector<2x16xf32>
    %c504 = arith.constant 504 : index
    %c0_4 = arith.constant 0 : index
    %4 = vector.load %arg0[%c504, %c0_4] : memref<520x64xf32, #tpu.memory_space<vmem>>, vector<16x2xf32>
    %c232 = arith.constant 232 : index
    %c0_5 = arith.constant 0 : index
    %5 = vector.load %arg0[%c232, %c0_5] : memref<520x64xf32, #tpu.memory_space<vmem>>, vector<2x64xf32>
    %cst = arith.constant dense<0.000000e+00> : vector<16x64xf32>
    %6 = tpu.matmul %1, %5, %cst {dimension_numbers = #tpu.dot_dimension_numbers<[1], [0], [0], [1], [0, 0, 1, 1], [], []>} : vector<16x2xf32>, vector<2x64xf32>, vector<16x64xf32> -> vector<16x64xf32>
    %c0_6 = arith.constant 0 : index
    %c0_7 = arith.constant 0 : index
    %7 = vector.load %arg0[%c0_6, %c0_7] : memref<520x64xf32, #tpu.memory_space<vmem>>, vector<3x64xf32>
    %cst_8 = arith.constant dense<0.000000e+00> : vector<16x64xf32>
    %8 = tpu.matmul %0, %7, %cst_8 {dimension_numbers = #tpu.dot_dimension_numbers<[1], [0], [0], [1], [0, 0, 1, 1], [], []>} : vector<16x3xf32>, vector<3x64xf32>, vector<16x64xf32> -> vector<16x64xf32>
    %c8 = arith.constant 8 : index
    %c0_9 = arith.constant 0 : index
    %9 = vector.load %arg0[%c8, %c0_9] : memref<520x64xf32, #tpu.memory_space<vmem>>, vector<1x64xf32>
    %10 = vector.broadcast %9 : vector<1x64xf32> to vector<16x64xf32>
    %11 = arith.addf %8, %10 : vector<16x64xf32>
    %cst_10 = arith.constant 0.000000e+00 : f32
    %12 = vector.broadcast %cst_10 : f32 to vector<16x64xf32>
    %13 = arith.maximumf %11, %12 : vector<16x64xf32>
    %c16_11 = arith.constant 16 : index
    %c0_12 = arith.constant 0 : index
    %14 = vector.load %arg0[%c16_11, %c0_12] : memref<520x64xf32, #tpu.memory_space<vmem>>, vector<64x64xf32>
    %cst_13 = arith.constant dense<0.000000e+00> : vector<16x64xf32>
    %15 = tpu.matmul %13, %14, %cst_13 {dimension_numbers = #tpu.dot_dimension_numbers<[1], [0], [0], [1], [0, 0, 1, 1], [], []>} : vector<16x64xf32>, vector<64x64xf32>, vector<16x64xf32> -> vector<16x64xf32>
    %c80 = arith.constant 80 : index
    %c0_14 = arith.constant 0 : index
    %16 = vector.load %arg0[%c80, %c0_14] : memref<520x64xf32, #tpu.memory_space<vmem>>, vector<1x64xf32>
    %17 = vector.broadcast %16 : vector<1x64xf32> to vector<16x64xf32>
    %18 = arith.addf %15, %17 : vector<16x64xf32>
    %cst_15 = arith.constant 0.000000e+00 : f32
    %19 = vector.broadcast %cst_15 : f32 to vector<16x64xf32>
    %20 = arith.maximumf %18, %19 : vector<16x64xf32>
    %c88 = arith.constant 88 : index
    %c0_16 = arith.constant 0 : index
    %21 = vector.load %arg0[%c88, %c0_16] : memref<520x64xf32, #tpu.memory_space<vmem>>, vector<64x64xf32>
    %cst_17 = arith.constant dense<0.000000e+00> : vector<16x64xf32>
    %22 = tpu.matmul %20, %21, %cst_17 {dimension_numbers = #tpu.dot_dimension_numbers<[1], [0], [0], [1], [0, 0, 1, 1], [], []>} : vector<16x64xf32>, vector<64x64xf32>, vector<16x64xf32> -> vector<16x64xf32>
    %c152 = arith.constant 152 : index
    %c0_18 = arith.constant 0 : index
    %23 = vector.load %arg0[%c152, %c0_18] : memref<520x64xf32, #tpu.memory_space<vmem>>, vector<1x64xf32>
    %24 = vector.broadcast %23 : vector<1x64xf32> to vector<16x64xf32>
    %25 = arith.addf %22, %24 : vector<16x64xf32>
    %cst_19 = arith.constant 0.000000e+00 : f32
    %26 = vector.broadcast %cst_19 : f32 to vector<16x64xf32>
    %27 = arith.maximumf %25, %26 : vector<16x64xf32>
    %cst_20 = arith.constant dense<0.000000e+00> : vector<2x64xf32>
    %28 = tpu.matmul %3, %27, %cst_20 {dimension_numbers = #tpu.dot_dimension_numbers<[1], [0], [0], [1], [0, 0, 1, 1], [], []>} : vector<2x16xf32>, vector<16x64xf32>, vector<2x64xf32> -> vector<2x64xf32>
    %c160 = arith.constant 160 : index
    %c0_21 = arith.constant 0 : index
    %29 = vector.load %arg0[%c160, %c0_21] : memref<520x64xf32, #tpu.memory_space<vmem>>, vector<64x64xf32>
    %cst_22 = arith.constant dense<0.000000e+00> : vector<2x64xf32>
    %30 = tpu.matmul %28, %29, %cst_22 {dimension_numbers = #tpu.dot_dimension_numbers<[1], [0], [0], [1], [0, 0, 1, 1], [], []>} : vector<2x64xf32>, vector<64x64xf32>, vector<2x64xf32> -> vector<2x64xf32>
    %c224 = arith.constant 224 : index
    %c0_23 = arith.constant 0 : index
    %31 = vector.load %arg0[%c224, %c0_23] : memref<520x64xf32, #tpu.memory_space<vmem>>, vector<1x64xf32>
    %32 = vector.broadcast %31 : vector<1x64xf32> to vector<2x64xf32>
    %33 = arith.addf %30, %32 : vector<2x64xf32>
    %c0_24 = arith.constant 0 : index
    %c0_25 = arith.constant 0 : index
    %34 = vector.load %arg2[%c0_24, %c0_25] : memref<2x64xf32, #tpu.memory_space<vmem>>, vector<2x64xf32>
    tpu.vector_store %arg2[%c0_24, %c0_25], %33 {strides = array<i32>} : memref<2x64xf32, #tpu.memory_space<vmem>>, vector<2x64xf32>,
    %35 = vector.extract_strided_slice %33 {offsets = [0, 0], sizes = [2, 32], strides = [1, 1]} : vector<2x64xf32> to vector<2x32xf32>
    %36 = vector.extract_strided_slice %33 {offsets = [0, 32], sizes = [2, 32], strides = [1, 1]} : vector<2x64xf32> to vector<2x32xf32>
    %cst_26 = arith.constant 5.000000e-01 : f32
    %37 = vector.broadcast %cst_26 : f32 to vector<2x32xf32>
    %38 = arith.mulf %37, %36 : vector<2x32xf32>
    %39 = math.exp %38 : vector<2x32xf32>
    %40 = arith.mulf %2, %39 : vector<2x32xf32>
    %41 = arith.addf %35, %40 : vector<2x32xf32>
    %c240 = arith.constant 240 : index
    %c0_27 = arith.constant 0 : index
    %42 = vector.load %arg0[%c240, %c0_27] : memref<520x64xf32, #tpu.memory_space<vmem>>, vector<32x64xf32>
    %cst_28 = arith.constant dense<0.000000e+00> : vector<2x64xf32>
    %43 = tpu.matmul %41, %42, %cst_28 {dimension_numbers = #tpu.dot_dimension_numbers<[1], [0], [0], [1], [0, 0, 1, 1], [], []>} : vector<2x32xf32>, vector<32x64xf32>, vector<2x64xf32> -> vector<2x64xf32>
    %cst_29 = arith.constant dense<0.000000e+00> : vector<16x64xf32>
    %44 = tpu.matmul %4, %43, %cst_29 {dimension_numbers = #tpu.dot_dimension_numbers<[1], [0], [0], [1], [0, 0, 1, 1], [], []>} : vector<16x2xf32>, vector<2x64xf32>, vector<16x64xf32> -> vector<16x64xf32>
    %45 = arith.addf %6, %44 : vector<16x64xf32>
    %c272 = arith.constant 272 : index
    %c0_30 = arith.constant 0 : index
    %46 = vector.load %arg0[%c272, %c0_30] : memref<520x64xf32, #tpu.memory_space<vmem>>, vector<1x64xf32>
    %47 = vector.broadcast %46 : vector<1x64xf32> to vector<16x64xf32>
    %48 = arith.addf %45, %47 : vector<16x64xf32>
    %cst_31 = arith.constant 0.000000e+00 : f32
    %49 = vector.broadcast %cst_31 : f32 to vector<16x64xf32>
    %50 = arith.maximumf %48, %49 : vector<16x64xf32>
    %c280 = arith.constant 280 : index
    %c0_32 = arith.constant 0 : index
    %51 = vector.load %arg0[%c280, %c0_32] : memref<520x64xf32, #tpu.memory_space<vmem>>, vector<64x64xf32>
    %cst_33 = arith.constant dense<0.000000e+00> : vector<16x64xf32>
    %52 = tpu.matmul %50, %51, %cst_33 {dimension_numbers = #tpu.dot_dimension_numbers<[1], [0], [0], [1], [0, 0, 1, 1], [], []>} : vector<16x64xf32>, vector<64x64xf32>, vector<16x64xf32> -> vector<16x64xf32>
    %c344 = arith.constant 344 : index
    %c0_34 = arith.constant 0 : index
    %53 = vector.load %arg0[%c344, %c0_34] : memref<520x64xf32, #tpu.memory_space<vmem>>, vector<1x64xf32>
    %54 = vector.broadcast %53 : vector<1x64xf32> to vector<16x64xf32>
    %55 = arith.addf %52, %54 : vector<16x64xf32>
    %cst_35 = arith.constant 0.000000e+00 : f32
    %56 = vector.broadcast %cst_35 : f32 to vector<16x64xf32>
    %57 = arith.maximumf %55, %56 : vector<16x64xf32>
    %c352 = arith.constant 352 : index
    %c0_36 = arith.constant 0 : index
    %58 = vector.load %arg0[%c352, %c0_36] : memref<520x64xf32, #tpu.memory_space<vmem>>, vector<64x64xf32>
    %cst_37 = arith.constant dense<0.000000e+00> : vector<16x64xf32>
    %59 = tpu.matmul %57, %58, %cst_37 {dimension_numbers = #tpu.dot_dimension_numbers<[1], [0], [0], [1], [0, 0, 1, 1], [], []>} : vector<16x64xf32>, vector<64x64xf32>, vector<16x64xf32> -> vector<16x64xf32>
    %c416 = arith.constant 416 : index
    %c0_38 = arith.constant 0 : index
    %60 = vector.load %arg0[%c416, %c0_38] : memref<520x64xf32, #tpu.memory_space<vmem>>, vector<1x64xf32>
    %61 = vector.broadcast %60 : vector<1x64xf32> to vector<16x64xf32>
    %62 = arith.addf %59, %61 : vector<16x64xf32>
    %cst_39 = arith.constant 0.000000e+00 : f32
    %63 = vector.broadcast %cst_39 : f32 to vector<16x64xf32>
    %64 = arith.maximumf %62, %63 : vector<16x64xf32>
    %c424 = arith.constant 424 : index
    %c0_40 = arith.constant 0 : index
    %65 = vector.load %arg0[%c424, %c0_40] : memref<520x64xf32, #tpu.memory_space<vmem>>, vector<64x4xf32>
    %cst_41 = arith.constant dense<0.000000e+00> : vector<16x4xf32>
    %66 = tpu.matmul %64, %65, %cst_41 {dimension_numbers = #tpu.dot_dimension_numbers<[1], [0], [0], [1], [0, 0, 1, 1], [], []>} : vector<16x64xf32>, vector<64x4xf32>, vector<16x4xf32> -> vector<16x4xf32>
    %c488 = arith.constant 488 : index
    %c0_42 = arith.constant 0 : index
    %67 = vector.load %arg0[%c488, %c0_42] : memref<520x64xf32, #tpu.memory_space<vmem>>, vector<1x4xf32>
    %68 = vector.broadcast %67 : vector<1x4xf32> to vector<16x4xf32>
    %69 = arith.addf %66, %68 : vector<16x4xf32>
    %70 = tpu.iota {dimensions = array<i32: 1>} : vector<16x4xi32>
    %c2_i32 = arith.constant 2 : i32
    %71 = vector.broadcast %c2_i32 : i32 to vector<16x4xi32>
    %72 = arith.cmpi slt, %70, %71 : vector<16x4xi32>
    %73 = arith.negf %69 : vector<16x4xf32>
    %74 = math.exp %73 : vector<16x4xf32>
    %cst_43 = arith.constant 1.000000e+00 : f32
    %75 = vector.broadcast %cst_43 : f32 to vector<16x4xf32>
    %76 = arith.addf %75, %74 : vector<16x4xf32>
    %77 = arith.divf %75, %76 : vector<16x4xf32>
    %cst_44 = arith.constant 0.000000e+00 : f32
    %78 = vector.broadcast %cst_44 : f32 to vector<16x4xf32>
    %79 = arith.maximumf %69, %78 : vector<16x4xf32>
    %80 = vector.broadcast %cst_44 : f32 to vector<16x4xf32>
    %81 = arith.subf %69, %80 : vector<16x4xf32>
    %82 = arith.cmpf one, %81, %81 : vector<16x4xf32>
    %83 = vector.broadcast %cst_44 : f32 to vector<16x4xf32>
    %84 = arith.addf %69, %83 : vector<16x4xf32>
    %85 = math.absf %81 : vector<16x4xf32>
    %cst_45 = arith.constant 0.000000e+00 : f32
    %86 = vector.broadcast %cst_45 : f32 to vector<16x4xf32>
    %87 = arith.subf %86, %85 : vector<16x4xf32>
    %88 = math.exp %87 : vector<16x4xf32>
    %89 = math.log1p %88 : vector<16x4xf32>
    %90 = arith.addf %79, %89 : vector<16x4xf32>
    %91 = arith.select %82, %84, %90 : vector<16x4xi1>, vector<16x4xf32>
    %92 = arith.select %72, %77, %91 : vector<16x4xi1>, vector<16x4xf32>
    %c0_46 = arith.constant 0 : index
    %c0_47 = arith.constant 0 : index
    %93 = vector.load %arg3[%c0_46, %c0_47] : memref<16x4xf32, #tpu.memory_space<vmem>>, vector<16x4xf32>
    tpu.vector_store %arg3[%c0_46, %c0_47], %92 {strides = array<i32>} : memref<16x4xf32, #tpu.memory_space<vmem>>, vector<16x4xf32>,
    return
  }
}

</mosaic_0001>

<llo_original>
// kernel: tpu_custom_call.1
$region0: #{tpu_custom_call.1}
  #allocation0 [shape = 'u32[]', space=smem, size = 0x4, offset = 0x4, fixed_abs, tag = 'smem constant byte address 0x4 - core index']
  #allocation1 [shape = 'u32[144,128]{1,0:T(1,128)}', space=vmem, size = 0x12000, scoped, tag = 'internal scratch']
  %s0 = inlined_call_operand.vmem [shape: f32[520,64], index: 0, kind: input, shape index: {}]
  %s1 = inlined_call_operand.vmem [shape: f32[34,32], index: 1, kind: input, shape index: {}]
  %s2 = inlined_call_operand.hbm [shape: f32[2,64], index: 2, kind: output, shape index: {0}]
  %s3 = inlined_call_operand.vmem [shape: f32[16,4], index: 3, kind: output, shape index: {1}]
  %4 = xla_tuple %s2, %s3
  %s5 = sld [smem:[#allocation0]]
  $region26: #{tpu_custom_call.1} parent=0
    _
  %s7 = ssub.s32 1, %s5
  %s8 = scalar_select 0, %s7, %s5
  $region1: #{tpu_custom_call.1} parent=0
    #allocation2 [shape = 'u8[1024]{0}', space=vmem, size = 0x400, scoped, tag = 'output window, operand 0, single buffered']
    #allocation3 [shape = 's32[1]{0}', space=sflag, size = 0x4, scoped, tag = 'scoped memory for tpu_custom_call.1']
    %9 = vsyncpa [#allocation3], 0
    // Predicated region
    $region2: #{tpu_custom_call.1} parent=1 // pred_check
      _
    $region3: #{tpu_custom_call.1} parent=1 // pred_check_branch
      %11 = sbr.rel (0) target = $region5
    $region4: #{tpu_custom_call.1} parent=1 // pred_region
      _
    $region5: #{tpu_custom_call.1} parent=1 // pred_fallthru
      _
    // Predicated region
    $region6: #{tpu_custom_call.1} parent=1 // pred_check
      _
    $region7: #{tpu_custom_call.1} parent=1 // pred_check_branch
      %13 = sbr.rel (0) target = $region9
    $region8: #{tpu_custom_call.1} parent=1 // pred_region
      _
    $region9: #{tpu_custom_call.1} parent=1 // pred_fallthru
      _
    %v14 = vld [vmem:[%s1] sm:$0xff]
    %v15 = vld [vmem:[%s1 + $0x8] sm:$0xff]
    %v16 = vld [vmem:[%s1 + $0x10] sm:$0xff]
    %v17 = vld [vmem:[%s1 + $0x18] sm:$0xff]
    %v18 = vld [vmem:[%s1 + $0x20] sm:$0x3]
    %v19 = vld [vmem:[%s0 + $0x1f0] sm:$0x3]
    %v20 = vld [vmem:[%s0 + $0x1f8] sm:$0xff]
    %v21 = vld [vmem:[%s0 + $0x200] sm:$0xff]
    %v22 = vld [vmem:[%s0 + $0xe8] sm:$0x3]
    %v23 = vld [vmem:[%s0] sm:$0x7]
    %v24 = vld [vmem:[%s0 + $0x8] sm:$0x1]
    %v25 = vlaneseq
    %v26 = vshrl.u32 %v25, 7
    %v27 = vsub.s32 0, %v26
    %v28 = vrot.slane %v24, %v27
    %vm29 = vcmask 23552
    %v31 = vsel %vm29, %v14, 0
    %v34 = vsel %vm29, %v15, 0
    %vm36 = vcmask 1042432
    %v38 = vsel %vm36, %v23, 0
    %40 = vmatprep.subr.mxu0 0.0
    %41 = vmatpush1.msra.mxu0 %v38
    %42 = vmatprep.subr.mxu0 0.0
    %43 = vmatpush1.msra.mxu0 0.0
    %44 = vmatprep.subr.mxu0 0.0
    %45 = vmatpush1.msra.mxu0 0.0
    %46 = vmatprep.subr.mxu0 0.0
    %47 = vmatpush1.msra.mxu0 0.0
    %48 = vmatprep.subr.mxu0 0.0
    %49 = vmatpush1.msra.mxu0 0.0
    %50 = vmatprep.subr.mxu0 0.0
    %51 = vmatpush1.msra.mxu0 0.0
    %52 = vmatprep.subr.mxu0 0.0
    %53 = vmatpush1.msra.mxu0 0.0
    %54 = vmatprep.subr.mxu0 0.0
    %55 = vmatpush1.msra.mxu0 0.0
    %56 = vmatprep.subr.mxu0 0.0
    %57 = vmatpush1.msra.mxu0 0.0
    %58 = vmatprep.subr.mxu0 0.0
    %59 = vmatpush1.msra.mxu0 0.0
    %60 = vmatprep.subr.mxu0 0.0
    %61 = vmatpush1.msra.mxu0 0.0
    %62 = vmatprep.subr.mxu0 0.0
    %63 = vmatpush1.msra.mxu0 0.0
    %64 = vmatprep.subr.mxu0 0.0
    %65 = vmatpush1.msra.mxu0 0.0
    %66 = vmatprep.subr.mxu0 0.0
    %67 = vmatpush1.msra.mxu0 0.0
    %68 = vmatprep.subr.mxu0 0.0
    %69 = vmatpush1.msra.mxu0 0.0
    %70 = vmatprep.subr.mxu0 0.0
    %71 = vmatpush1.msra.mxu0 0.0
    %72 = vmatprep.subr.mxu0 0.0
    %73 = vmatpush1.msra.mxu0 0.0
    %74 = vmatprep.subr.mxu0 0.0
    %75 = vmatpush1.msra.mxu0 0.0
    %76 = vmatprep.subr.mxu0 0.0
    %77 = vmatpush1.msra.mxu0 0.0
    %78 = vmatprep.subr.mxu0 0.0
    %79 = vmatpush1.msra.mxu0 0.0
    %80 = vmatprep.subr.mxu0 0.0
    %81 = vmatpush1.msra.mxu0 0.0
    %82 = vmatprep.subr.mxu0 0.0
    %83 = vmatpush1.msra.mxu0 0.0
    %84 = vmatprep.subr.mxu0 0.0
    %85 = vmatpush1.msra.mxu0 0.0
    %86 = vmatprep.subr.mxu0 0.0
    %87 = vmatpush1.msra.mxu0 0.0
    %88 = vmatprep.subr.mxu0 0.0
    %89 = vmatpush1.msra.mxu0 0.0
    %90 = vmatprep.subr.mxu0 0.0
    %91 = vmatpush1.msra.mxu0 0.0
    %92 = vmatprep.subr.mxu0 0.0
    %93 = vmatpush1.msra.mxu0 0.0
    %94 = vmatprep.subr.mxu0 0.0
    %95 = vmatpush1.msra.mxu0 0.0
    %96 = vmatprep.subr.mxu0 0.0
    %97 = vmatpush1.msra.mxu0 0.0
    %98 = vmatprep.subr.mxu0 0.0
    %99 = vmatpush1.msra.mxu0 0.0
    %100 = vmatprep.subr.mxu0 0.0
    %101 = vmatpush1.msra.mxu0 0.0
    %102 = vmatprep.subr.mxu0 0.0
    %103 = vmatpush1.msra.mxu0 0.0
    %104 = vmatprep.mubr.f32.mxu0 0.0
    %105 = vmatmul.mubr.f32.gmra.mrb[0].mxu0 %v31
    %v106 = vpop.f32.mrb[0].mxu0
    %v107 = vadd.f32 %v28, %v106
    %v108 = vpop.f32.mrb[0].mxu0
    %109 = vmatprep.mubr.f32.mxu0 0.0
    %110 = vmatmul.mubr.f32.gmra.mrb[0].mxu0 %v34
    %v111 = vpop.f32.mrb[0].mxu0
    %v112 = vadd.f32 %v28, %v111
    %v113 = vpop.f32.mrb[0].mxu0
    %114 = vdwg.mxu0
    %v115 = vmax.f32 %v107, 0.0
    %v116 = vmax.f32 %v112, 0.0
    %v117 = vld [vmem:[%s0 + $0x10] sm:$0xff]
    %v118 = vld [vmem:[%s0 + $0x18] sm:$0xff]
    %v119 = vld [vmem:[%s0 + $0x20] sm:$0xff]
    %v120 = vld [vmem:[%s0 + $0x28] sm:$0xff]
    %v121 = vld [vmem:[%s0 + $0x30] sm:$0xff]
    %v122 = vld [vmem:[%s0 + $0x38] sm:$0xff]
    %v123 = vld [vmem:[%s0 + $0x40] sm:$0xff]
    %v124 = vld [vmem:[%s0 + $0x48] sm:$0xff]
    %v125 = vld [vmem:[%s0 + $0x50] sm:$0x1]
    %v126 = vlaneseq
    %v127 = vshrl.u32 %v126, 7
    %v128 = vsub.s32 0, %v127
    %v129 = vrot.slane %v125, %v128
    %vm130 = vcmask 523264
    %v132 = vsel %vm130, %v115, 0
    %v135 = vsel %vm130, %v116, 0
    %137 = vmatprep.subr.mxu0 0.0
    %138 = vmatpush1.msra.mxu0 %v117
    %139 = vmatprep.subr.mxu0 0.0
    %140 = vmatpush1.msra.mxu0 %v118
    %141 = vmatprep.subr.mxu0 0.0
    %142 = vmatpush1.msra.mxu0 %v119
    %143 = vmatprep.subr.mxu0 0.0
    %144 = vmatpush1.msra.mxu0 %v120
    %145 = vmatprep.subr.mxu0 0.0
    %146 = vmatpush1.msra.mxu0 %v121
    %147 = vmatprep.subr.mxu0 0.0
    %148 = vmatpush1.msra.mxu0 %v122
    %149 = vmatprep.subr.mxu0 0.0
    %150 = vmatpush1.msra.mxu0 %v123
    %151 = vmatprep.subr.mxu0 0.0
    %152 = vmatpush1.msra.mxu0 %v124
    %153 = vmatprep.subr.mxu0 0.0
    %154 = vmatpush1.msra.mxu0 0.0
    %155 = vmatprep.subr.mxu0 0.0
    %156 = vmatpush1.msra.mxu0 0.0
    %157 = vmatprep.subr.mxu0 0.0
    %158 = vmatpush1.msra.mxu0 0.0
    %159 = vmatprep.subr.mxu0 0.0
    %160 = vmatpush1.msra.mxu0 0.0
    %161 = vmatprep.subr.mxu0 0.0
    %162 = vmatpush1.msra.mxu0 0.0
    %163 = vmatprep.subr.mxu0 0.0
    %164 = vmatpush1.msra.mxu0 0.0
    %165 = vmatprep.subr.mxu0 0.0
    %166 = vmatpush1.msra.mxu0 0.0
    %167 = vmatprep.subr.mxu0 0.0
    %168 = vmatpush1.msra.mxu0 0.0
    %169 = vmatprep.subr.mxu0 0.0
    %170 = vmatpush1.msra.mxu0 0.0
    %171 = vmatprep.subr.mxu0 0.0
    %172 = vmatpush1.msra.mxu0 0.0
    %173 = vmatprep.subr.mxu0 0.0
    %174 = vmatpush1.msra.mxu0 0.0
    %175 = vmatprep.subr.mxu0 0.0
    %176 = vmatpush1.msra.mxu0 0.0
    %177 = vmatprep.subr.mxu0 0.0
    %178 = vmatpush1.msra.mxu0 0.0
    %179 = vmatprep.subr.mxu0 0.0
    %180 = vmatpush1.msra.mxu0 0.0
    %181 = vmatprep.subr.mxu0 0.0
    %182 = vmatpush1.msra.mxu0 0.0
    %183 = vmatprep.subr.mxu0 0.0
    %184 = vmatpush1.msra.mxu0 0.0
    %185 = vmatprep.subr.mxu0 0.0
    %186 = vmatpush1.msra.mxu0 0.0
    %187 = vmatprep.subr.mxu0 0.0
    %188 = vmatpush1.msra.mxu0 0.0
    %189 = vmatprep.subr.mxu0 0.0
    %190 = vmatpush1.msra.mxu0 0.0
    %191 = vmatprep.subr.mxu0 0.0
    %192 = vmatpush1.msra.mxu0 0.0
    %193 = vmatprep.subr.mxu0 0.0
    %194 = vmatpush1.msra.mxu0 0.0
    %195 = vmatprep.subr.mxu0 0.0
    %196 = vmatpush1.msra.mxu0 0.0
    %197 = vmatprep.subr.mxu0 0.0
    %198 = vmatpush1.msra.mxu0 0.0
    %199 = vmatprep.subr.mxu0 0.0
    %200 = vmatpush1.msra.mxu0 0.0
    %201 = vmatprep.mubr.f32.mxu0 0.0
    %202 = vmatmul.mubr.f32.gmra.mrb[0].mxu0 %v132
    %v203 = vpop.f32.mrb[0].mxu0
    %v204 = vadd.f32 %v129, %v203
    %v205 = vpop.f32.mrb[0].mxu0
    %206 = vmatprep.mubr.f32.mxu0 0.0
    %207 = vmatmul.mubr.f32.gmra.mrb[0].mxu0 %v135
    %v208 = vpop.f32.mrb[0].mxu0
    %v209 = vadd.f32 %v129, %v208
    %v210 = vpop.f32.mrb[0].mxu0
    %211 = vdwg.mxu0
    %v212 = vmax.f32 %v204, 0.0
    %v213 = vmax.f32 %v209, 0.0
    %v214 = vld [vmem:[%s0 + $0x58] sm:$0xff]
    %v215 = vld [vmem:[%s0 + $0x60] sm:$0xff]
    %v216 = vld [vmem:[%s0 + $0x68] sm:$0xff]
    %v217 = vld [vmem:[%s0 + $0x70] sm:$0xff]
    %v218 = vld [vmem:[%s0 + $0x78] sm:$0xff]
    %v219 = vld [vmem:[%s0 + $0x80] sm:$0xff]
    %v220 = vld [vmem:[%s0 + $0x88] sm:$0xff]
    %v221 = vld [vmem:[%s0 + $0x90] sm:$0xff]
    %v222 = vld [vmem:[%s0 + $0x98] sm:$0x1]
    %v223 = vlaneseq
    %v224 = vshrl.u32 %v223, 7
    %v225 = vsub.s32 0, %v224
    %v226 = vrot.slane %v222, %v225
    %v228 = vsel %vm130, %v212, 0
    %v231 = vsel %vm130, %v213, 0
    %233 = vmatprep.subr.mxu0 0.0
    %234 = vmatpush1.msra.mxu0 %v214
    %235 = vmatprep.subr.mxu0 0.0
    %236 = vmatpush1.msra.mxu0 %v215
    %237 = vmatprep.subr.mxu0 0.0
    %238 = vmatpush1.msra.mxu0 %v216
    %239 = vmatprep.subr.mxu0 0.0
    %240 = vmatpush1.msra.mxu0 %v217
    %241 = vmatprep.subr.mxu0 0.0
    %242 = vmatpush1.msra.mxu0 %v218
    %243 = vmatprep.subr.mxu0 0.0
    %244 = vmatpush1.msra.mxu0 %v219
    %245 = vmatprep.subr.mxu0 0.0
    %246 = vmatpush1.msra.mxu0 %v220
    %247 = vmatprep.subr.mxu0 0.0
    %248 = vmatpush1.msra.mxu0 %v221
    %249 = vmatprep.subr.mxu0 0.0
    %250 = vmatpush1.msra.mxu0 0.0
    %251 = vmatprep.subr.mxu0 0.0
    %252 = vmatpush1.msra.mxu0 0.0
    %253 = vmatprep.subr.mxu0 0.0
    %254 = vmatpush1.msra.mxu0 0.0
    %255 = vmatprep.subr.mxu0 0.0
    %256 = vmatpush1.msra.mxu0 0.0
    %257 = vmatprep.subr.mxu0 0.0
    %258 = vmatpush1.msra.mxu0 0.0
    %259 = vmatprep.subr.mxu0 0.0
    %260 = vmatpush1.msra.mxu0 0.0
    %261 = vmatprep.subr.mxu0 0.0
    %262 = vmatpush1.msra.mxu0 0.0
    %263 = vmatprep.subr.mxu0 0.0
    %264 = vmatpush1.msra.mxu0 0.0
    %265 = vmatprep.subr.mxu0 0.0
    %266 = vmatpush1.msra.mxu0 0.0
    %267 = vmatprep.subr.mxu0 0.0
    %268 = vmatpush1.msra.mxu0 0.0
    %269 = vmatprep.subr.mxu0 0.0
    %270 = vmatpush1.msra.mxu0 0.0
    %271 = vmatprep.subr.mxu0 0.0
    %272 = vmatpush1.msra.mxu0 0.0
    %273 = vmatprep.subr.mxu0 0.0
    %274 = vmatpush1.msra.mxu0 0.0
    %275 = vmatprep.subr.mxu0 0.0
    %276 = vmatpush1.msra.mxu0 0.0
    %277 = vmatprep.subr.mxu0 0.0
    %278 = vmatpush1.msra.mxu0 0.0
    %279 = vmatprep.subr.mxu0 0.0
    %280 = vmatpush1.msra.mxu0 0.0
    %281 = vmatprep.subr.mxu0 0.0
    %282 = vmatpush1.msra.mxu0 0.0
    %283 = vmatprep.subr.mxu0 0.0
    %284 = vmatpush1.msra.mxu0 0.0
    %285 = vmatprep.subr.mxu0 0.0
    %286 = vmatpush1.msra.mxu0 0.0
    %287 = vmatprep.subr.mxu0 0.0
    %288 = vmatpush1.msra.mxu0 0.0
    %289 = vmatprep.subr.mxu0 0.0
    %290 = vmatpush1.msra.mxu0 0.0
    %291 = vmatprep.subr.mxu0 0.0
    %292 = vmatpush1.msra.mxu0 0.0
    %293 = vmatprep.subr.mxu0 0.0
    %294 = vmatpush1.msra.mxu0 0.0
    %295 = vmatprep.subr.mxu0 0.0
    %296 = vmatpush1.msra.mxu0 0.0
    %297 = vmatprep.mubr.f32.mxu0 0.0
    %298 = vmatmul.mubr.f32.gmra.mrb[0].mxu0 %v228
    %v299 = vpop.f32.mrb[0].mxu0
    %v300 = vadd.f32 %v226, %v299
    %v301 = vpop.f32.mrb[0].mxu0
    %302 = vmatprep.mubr.f32.mxu0 0.0
    %303 = vmatmul.mubr.f32.gmra.mrb[0].mxu0 %v231
    %v304 = vpop.f32.mrb[0].mxu0
    %v305 = vadd.f32 %v226, %v304
    %v306 = vpop.f32.mrb[0].mxu0
    %307 = vdwg.mxu0
    %v308 = vmax.f32 %v300, 0.0
    %v309 = vmax.f32 %v305, 0.0
    %vm310 = vcmask 130048
    %v312 = vsel %vm310, %v19, 0
    %314 = vmatprep.subr.mxu0 0.0
    %315 = vmatpush1.msra.mxu0 %v308
    %316 = vmatprep.subr.mxu0 0.0
    %317 = vmatpush1.msra.mxu0 %v309
    %318 = vmatprep.subr.mxu0 0.0
    %319 = vmatpush1.msra.mxu0 0.0
    %320 = vmatprep.subr.mxu0 0.0
    %321 = vmatpush1.msra.mxu0 0.0
    %322 = vmatprep.subr.mxu0 0.0
    %323 = vmatpush1.msra.mxu0 0.0
    %324 = vmatprep.subr.mxu0 0.0
    %325 = vmatpush1.msra.mxu0 0.0
    %326 = vmatprep.subr.mxu0 0.0
    %327 = vmatpush1.msra.mxu0 0.0
    %328 = vmatprep.subr.mxu0 0.0
    %329 = vmatpush1.msra.mxu0 0.0
    %330 = vmatprep.subr.mxu0 0.0
    %331 = vmatpush1.msra.mxu0 0.0
    %332 = vmatprep.subr.mxu0 0.0
    %333 = vmatpush1.msra.mxu0 0.0
    %334 = vmatprep.subr.mxu0 0.0
    %335 = vmatpush1.msra.mxu0 0.0
    %336 = vmatprep.subr.mxu0 0.0
    %337 = vmatpush1.msra.mxu0 0.0
    %338 = vmatprep.subr.mxu0 0.0
    %339 = vmatpush1.msra.mxu0 0.0
    %340 = vmatprep.subr.mxu0 0.0
    %341 = vmatpush1.msra.mxu0 0.0
    %342 = vmatprep.subr.mxu0 0.0
    %343 = vmatpush1.msra.mxu0 0.0
    %344 = vmatprep.subr.mxu0 0.0
    %345 = vmatpush1.msra.mxu0 0.0
    %346 = vmatprep.subr.mxu0 0.0
    %347 = vmatpush1.msra.mxu0 0.0
    %348 = vmatprep.subr.mxu0 0.0
    %349 = vmatpush1.msra.mxu0 0.0
    %350 = vmatprep.subr.mxu0 0.0
    %351 = vmatpush1.msra.mxu0 0.0
    %352 = vmatprep.subr.mxu0 0.0
    %353 = vmatpush1.msra.mxu0 0.0
    %354 = vmatprep.subr.mxu0 0.0
    %355 = vmatpush1.msra.mxu0 0.0
    %356 = vmatprep.subr.mxu0 0.0
    %357 = vmatpush1.msra.mxu0 0.0
    %358 = vmatprep.subr.mxu0 0.0
    %359 = vmatpush1.msra.mxu0 0.0
    %360 = vmatprep.subr.mxu0 0.0
    %361 = vmatpush1.msra.mxu0 0.0
    %362 = vmatprep.subr.mxu0 0.0
    %363 = vmatpush1.msra.mxu0 0.0
    %364 = vmatprep.subr.mxu0 0.0
    %365 = vmatpush1.msra.mxu0 0.0
    %366 = vmatprep.subr.mxu0 0.0
    %367 = vmatpush1.msra.mxu0 0.0
    %368 = vmatprep.subr.mxu0 0.0
    %369 = vmatpush1.msra.mxu0 0.0
    %370 = vmatprep.subr.mxu0 0.0
    %371 = vmatpush1.msra.mxu0 0.0
    %372 = vmatprep.subr.mxu0 0.0
    %373 = vmatpush1.msra.mxu0 0.0
    %374 = vmatprep.subr.mxu0 0.0
    %375 = vmatpush1.msra.mxu0 0.0
    %376 = vmatprep.subr.mxu0 0.0
    %377 = vmatpush1.msra.mxu0 0.0
    %378 = vmatprep.mubr.f32.mxu0 0.0
    %379 = vmatmul.mubr.f32.gmra.mrb[0].mxu0 %v312
    %v380 = vpop.f32.mrb[0].mxu0
    %v381 = vadd.f32 0.0, %v380
    %v382 = vpop.f32.mrb[0].mxu0
    %383 = vdwg.mxu0
    %v384 = vld [vmem:[%s0 + $0xa0] sm:$0xff]
    %v385 = vld [vmem:[%s0 + $0xa8] sm:$0xff]
    %v386 = vld [vmem:[%s0 + $0xb0] sm:$0xff]
    %v387 = vld [vmem:[%s0 + $0xb8] sm:$0xff]
    %v388 = vld [vmem:[%s0 + $0xc0] sm:$0xff]
    %v389 = vld [vmem:[%s0 + $0xc8] sm:$0xff]
    %v390 = vld [vmem:[%s0 + $0xd0] sm:$0xff]
    %v391 = vld [vmem:[%s0 + $0xd8] sm:$0xff]
    %v392 = vld [vmem:[%s0 + $0xe0] sm:$0x1]
    %v393 = vlaneseq
    %v394 = vshrl.u32 %v393, 7
    %v395 = vsub.s32 0, %v394
    %v396 = vrot.slane %v392, %v395
    %v398 = vsel %vm130, %v381, 0
    %400 = vmatprep.subr.mxu0 0.0
    %401 = vmatpush1.msra.mxu0 %v384
    %402 = vmatprep.subr.mxu0 0.0
    %403 = vmatpush1.msra.mxu0 %v385
    %404 = vmatprep.subr.mxu0 0.0
    %405 = vmatpush1.msra.mxu0 %v386
    %406 = vmatprep.subr.mxu0 0.0
    %407 = vmatpush1.msra.mxu0 %v387
    %408 = vmatprep.subr.mxu0 0.0
    %409 = vmatpush1.msra.mxu0 %v388
    %410 = vmatprep.subr.mxu0 0.0
    %411 = vmatpush1.msra.mxu0 %v389
    %412 = vmatprep.subr.mxu0 0.0
    %413 = vmatpush1.msra.mxu0 %v390
    %414 = vmatprep.subr.mxu0 0.0
    %415 = vmatpush1.msra.mxu0 %v391
    %416 = vmatprep.subr.mxu0 0.0
    %417 = vmatpush1.msra.mxu0 0.0
    %418 = vmatprep.subr.mxu0 0.0
    %419 = vmatpush1.msra.mxu0 0.0
    %420 = vmatprep.subr.mxu0 0.0
    %421 = vmatpush1.msra.mxu0 0.0
    %422 = vmatprep.subr.mxu0 0.0
    %423 = vmatpush1.msra.mxu0 0.0
    %424 = vmatprep.subr.mxu0 0.0
    %425 = vmatpush1.msra.mxu0 0.0
    %426 = vmatprep.subr.mxu0 0.0
    %427 = vmatpush1.msra.mxu0 0.0
    %428 = vmatprep.subr.mxu0 0.0
    %429 = vmatpush1.msra.mxu0 0.0
    %430 = vmatprep.subr.mxu0 0.0
    %431 = vmatpush1.msra.mxu0 0.0
    %432 = vmatprep.subr.mxu0 0.0
    %433 = vmatpush1.msra.mxu0 0.0
    %434 = vmatprep.subr.mxu0 0.0
    %435 = vmatpush1.msra.mxu0 0.0
    %436 = vmatprep.subr.mxu0 0.0
    %437 = vmatpush1.msra.mxu0 0.0
    %438 = vmatprep.subr.mxu0 0.0
    %439 = vmatpush1.msra.mxu0 0.0
    %440 = vmatprep.subr.mxu0 0.0
    %441 = vmatpush1.msra.mxu0 0.0
    %442 = vmatprep.subr.mxu0 0.0
    %443 = vmatpush1.msra.mxu0 0.0
    %444 = vmatprep.subr.mxu0 0.0
    %445 = vmatpush1.msra.mxu0 0.0
    %446 = vmatprep.subr.mxu0 0.0
    %447 = vmatpush1.msra.mxu0 0.0
    %448 = vmatprep.subr.mxu0 0.0
    %449 = vmatpush1.msra.mxu0 0.0
    %450 = vmatprep.subr.mxu0 0.0
    %451 = vmatpush1.msra.mxu0 0.0
    %452 = vmatprep.subr.mxu0 0.0
    %453 = vmatpush1.msra.mxu0 0.0
    %454 = vmatprep.subr.mxu0 0.0
    %455 = vmatpush1.msra.mxu0 0.0
    %456 = vmatprep.subr.mxu0 0.0
    %457 = vmatpush1.msra.mxu0 0.0
    %458 = vmatprep.subr.mxu0 0.0
    %459 = vmatpush1.msra.mxu0 0.0
    %460 = vmatprep.subr.mxu0 0.0
    %461 = vmatpush1.msra.mxu0 0.0
    %462 = vmatprep.subr.mxu0 0.0
    %463 = vmatpush1.msra.mxu0 0.0
    %464 = vmatprep.mubr.f32.mxu0 0.0
    %465 = vmatmul.mubr.f32.gmra.mrb[0].mxu0 %v398
    %v466 = vpop.f32.mrb[0].mxu0
    %v467 = vadd.f32 %v396, %v466
    %v468 = vpop.f32.mrb[0].mxu0
    %469 = vdwg.mxu0
    %vm470 = vcmask 517120
    %471 = vst.msk [vmem:[#allocation2] sm:$0x3] %vm470, %v467
    %v472 = vmul.f32 %v467, 0.5
    %v473 = vmul.f32 %v472, 1.442695
    %v474 = vpow.pop %v473
    %476 = vrot.lane.b32.xlu0 %v474, 96
    %v477 = vpop.permute.xlu0 %476
    %v479 = vmul.f32 %v18, %v477
    %v480 = vadd.f32 %v467, %v479
    %v481 = vld [vmem:[%s0 + $0xf0] sm:$0xff]
    %v482 = vld [vmem:[%s0 + $0xf8] sm:$0xff]
    %v483 = vld [vmem:[%s0 + $0x100] sm:$0xff]
    %v484 = vld [vmem:[%s0 + $0x108] sm:$0xff]
    %vm485 = vcmask 261120
    %v487 = vsel %vm485, %v480, 0
    %489 = vmatprep.subr.mxu0 0.0
    %490 = vmatpush1.msra.mxu0 %v481
    %491 = vmatprep.subr.mxu0 0.0
    %492 = vmatpush1.msra.mxu0 %v482
    %493 = vmatprep.subr.mxu0 0.0
    %494 = vmatpush1.msra.mxu0 %v483
    %495 = vmatprep.subr.mxu0 0.0
    %496 = vmatpush1.msra.mxu0 %v484
    %497 = vmatprep.subr.mxu0 0.0
    %498 = vmatpush1.msra.mxu0 0.0
    %499 = vmatprep.subr.mxu0 0.0
    %500 = vmatpush1.msra.mxu0 0.0
    %501 = vmatprep.subr.mxu0 0.0
    %502 = vmatpush1.msra.mxu0 0.0
    %503 = vmatprep.subr.mxu0 0.0
    %504 = vmatpush1.msra.mxu0 0.0
    %505 = vmatprep.subr.mxu0 0.0
    %506 = vmatpush1.msra.mxu0 0.0
    %507 = vmatprep.subr.mxu0 0.0
    %508 = vmatpush1.msra.mxu0 0.0
    %509 = vmatprep.subr.mxu0 0.0
    %510 = vmatpush1.msra.mxu0 0.0
    %511 = vmatprep.subr.mxu0 0.0
    %512 = vmatpush1.msra.mxu0 0.0
    %513 = vmatprep.subr.mxu0 0.0
    %514 = vmatpush1.msra.mxu0 0.0
    %515 = vmatprep.subr.mxu0 0.0
    %516 = vmatpush1.msra.mxu0 0.0
    %517 = vmatprep.subr.mxu0 0.0
    %518 = vmatpush1.msra.mxu0 0.0
    %519 = vmatprep.subr.mxu0 0.0
    %520 = vmatpush1.msra.mxu0 0.0
    %521 = vmatprep.subr.mxu0 0.0
    %522 = vmatpush1.msra.mxu0 0.0
    %523 = vmatprep.subr.mxu0 0.0
    %524 = vmatpush1.msra.mxu0 0.0
    %525 = vmatprep.subr.mxu0 0.0
    %526 = vmatpush1.msra.mxu0 0.0
    %527 = vmatprep.subr.mxu0 0.0
    %528 = vmatpush1.msra.mxu0 0.0
    %529 = vmatprep.subr.mxu0 0.0
    %530 = vmatpush1.msra.mxu0 0.0
    %531 = vmatprep.subr.mxu0 0.0
    %532 = vmatpush1.msra.mxu0 0.0
    %533 = vmatprep.subr.mxu0 0.0
    %534 = vmatpush1.msra.mxu0 0.0
    %535 = vmatprep.subr.mxu0 0.0
    %536 = vmatpush1.msra.mxu0 0.0
    %537 = vmatprep.subr.mxu0 0.0
    %538 = vmatpush1.msra.mxu0 0.0
    %539 = vmatprep.subr.mxu0 0.0
    %540 = vmatpush1.msra.mxu0 0.0
    %541 = vmatprep.subr.mxu0 0.0
    %542 = vmatpush1.msra.mxu0 0.0
    %543 = vmatprep.subr.mxu0 0.0
    %544 = vmatpush1.msra.mxu0 0.0
    %545 = vmatprep.subr.mxu0 0.0
    %546 = vmatpush1.msra.mxu0 0.0
    %547 = vmatprep.subr.mxu0 0.0
    %548 = vmatpush1.msra.mxu0 0.0
    %549 = vmatprep.subr.mxu0 0.0
    %550 = vmatpush1.msra.mxu0 0.0
    %551 = vmatprep.subr.mxu0 0.0
    %552 = vmatpush1.msra.mxu0 0.0
    %553 = vmatprep.mubr.f32.mxu0 0.0
    %554 = vmatmul.mubr.f32.gmra.mrb[0].mxu0 %v487
    %v555 = vpop.f32.mrb[0].mxu0
    %v556 = vadd.f32 0.0, %v555
    %v557 = vpop.f32.mrb[0].mxu0
    %558 = vdwg.mxu0
    %vm559 = vcmask 15360
    %v561 = vsel %vm559, %v20, 0
    %v564 = vsel %vm559, %v21, 0
    %vm566 = vcmask 1041408
    %v568 = vsel %vm566, %v556, 0
    %570 = vmatprep.subr.mxu0 0.0
    %571 = vmatpush1.msra.mxu0 %v568
    %572 = vmatprep.subr.mxu0 0.0
    %573 = vmatpush1.msra.mxu0 0.0
    %574 = vmatprep.subr.mxu0 0.0
    %575 = vmatpush1.msra.mxu0 0.0
    %576 = vmatprep.subr.mxu0 0.0
    %577 = vmatpush1.msra.mxu0 0.0
    %578 = vmatprep.subr.mxu0 0.0
    %579 = vmatpush1.msra.mxu0 0.0
    %580 = vmatprep.subr.mxu0 0.0
    %581 = vmatpush1.msra.mxu0 0.0
    %582 = vmatprep.subr.mxu0 0.0
    %583 = vmatpush1.msra.mxu0 0.0
    %584 = vmatprep.subr.mxu0 0.0
    %585 = vmatpush1.msra.mxu0 0.0
    %586 = vmatprep.subr.mxu0 0.0
    %587 = vmatpush1.msra.mxu0 0.0
    %588 = vmatprep.subr.mxu0 0.0
    %589 = vmatpush1.msra.mxu0 0.0
    %590 = vmatprep.subr.mxu0 0.0
    %591 = vmatpush1.msra.mxu0 0.0
    %592 = vmatprep.subr.mxu0 0.0
    %593 = vmatpush1.msra.mxu0 0.0
    %594 = vmatprep.subr.mxu0 0.0
    %595 = vmatpush1.msra.mxu0 0.0
    %596 = vmatprep.subr.mxu0 0.0
    %597 = vmatpush1.msra.mxu0 0.0
    %598 = vmatprep.subr.mxu0 0.0
    %599 = vmatpush1.msra.mxu0 0.0
    %600 = vmatprep.subr.mxu0 0.0
    %601 = vmatpush1.msra.mxu0 0.0
    %602 = vmatprep.subr.mxu0 0.0
    %603 = vmatpush1.msra.mxu0 0.0
    %604 = vmatprep.subr.mxu0 0.0
    %605 = vmatpush1.msra.mxu0 0.0
    %606 = vmatprep.subr.mxu0 0.0
    %607 = vmatpush1.msra.mxu0 0.0
    %608 = vmatprep.subr.mxu0 0.0
    %609 = vmatpush1.msra.mxu0 0.0
    %610 = vmatprep.subr.mxu0 0.0
    %611 = vmatpush1.msra.mxu0 0.0
    %612 = vmatprep.subr.mxu0 0.0
    %613 = vmatpush1.msra.mxu0 0.0
    %614 = vmatprep.subr.mxu0 0.0
    %615 = vmatpush1.msra.mxu0 0.0
    %616 = vmatprep.subr.mxu0 0.0
    %617 = vmatpush1.msra.mxu0 0.0
    %618 = vmatprep.subr.mxu0 0.0
    %619 = vmatpush1.msra.mxu0 0.0
    %620 = vmatprep.subr.mxu0 0.0
    %621 = vmatpush1.msra.mxu0 0.0
    %622 = vmatprep.subr.mxu0 0.0
    %623 = vmatpush1.msra.mxu0 0.0
    %624 = vmatprep.subr.mxu0 0.0
    %625 = vmatpush1.msra.mxu0 0.0
    %626 = vmatprep.subr.mxu0 0.0
    %627 = vmatpush1.msra.mxu0 0.0
    %628 = vmatprep.subr.mxu0 0.0
    %629 = vmatpush1.msra.mxu0 0.0
    %630 = vmatprep.subr.mxu0 0.0
    %631 = vmatpush1.msra.mxu0 0.0
    %632 = vmatprep.subr.mxu0 0.0
    %633 = vmatpush1.msra.mxu0 0.0
    %634 = vmatprep.mubr.f32.mxu0 0.0
    %635 = vmatmul.mubr.f32.gmra.mrb[0].mxu0 %v561
    %v636 = vpop.f32.mrb[0].mxu0
    %v637 = vadd.f32 0.0, %v636
    %v638 = vpop.f32.mrb[0].mxu0
    %639 = vmatprep.mubr.f32.mxu0 0.0
    %640 = vmatmul.mubr.f32.gmra.mrb[0].mxu0 %v564
    %v641 = vpop.f32.mrb[0].mxu0
    %v642 = vadd.f32 0.0, %v641
    %v643 = vpop.f32.mrb[0].mxu0
    %644 = vdwg.mxu0
    %v646 = vsel %vm559, %v16, 0
    %v649 = vsel %vm559, %v17, 0
    %v652 = vsel %vm566, %v22, 0
    %654 = vmatprep.subr.mxu0 0.0
    %655 = vmatpush1.msra.mxu0 %v652
    %656 = vmatprep.subr.mxu0 0.0
    %657 = vmatpush1.msra.mxu0 0.0
    %658 = vmatprep.subr.mxu0 0.0
    %659 = vmatpush1.msra.mxu0 0.0
    %660 = vmatprep.subr.mxu0 0.0
    %661 = vmatpush1.msra.mxu0 0.0
    %662 = vmatprep.subr.mxu0 0.0
    %663 = vmatpush1.msra.mxu0 0.0
    %664 = vmatprep.subr.mxu0 0.0
    %665 = vmatpush1.msra.mxu0 0.0
    %666 = vmatprep.subr.mxu0 0.0
    %667 = vmatpush1.msra.mxu0 0.0
    %668 = vmatprep.subr.mxu0 0.0
    %669 = vmatpush1.msra.mxu0 0.0
    %670 = vmatprep.subr.mxu0 0.0
    %671 = vmatpush1.msra.mxu0 0.0
    %672 = vmatprep.subr.mxu0 0.0
    %673 = vmatpush1.msra.mxu0 0.0
    %674 = vmatprep.subr.mxu0 0.0
    %675 = vmatpush1.msra.mxu0 0.0
    %676 = vmatprep.subr.mxu0 0.0
    %677 = vmatpush1.msra.mxu0 0.0
    %678 = vmatprep.subr.mxu0 0.0
    %679 = vmatpush1.msra.mxu0 0.0
    %680 = vmatprep.subr.mxu0 0.0
    %681 = vmatpush1.msra.mxu0 0.0
    %682 = vmatprep.subr.mxu0 0.0
    %683 = vmatpush1.msra.mxu0 0.0
    %684 = vmatprep.subr.mxu0 0.0
    %685 = vmatpush1.msra.mxu0 0.0
    %686 = vmatprep.subr.mxu0 0.0
    %687 = vmatpush1.msra.mxu0 0.0
    %688 = vmatprep.subr.mxu0 0.0
    %689 = vmatpush1.msra.mxu0 0.0
    %690 = vmatprep.subr.mxu0 0.0
    %691 = vmatpush1.msra.mxu0 0.0
    %692 = vmatprep.subr.mxu0 0.0
    %693 = vmatpush1.msra.mxu0 0.0
    %694 = vmatprep.subr.mxu0 0.0
    %695 = vmatpush1.msra.mxu0 0.0
    %696 = vmatprep.subr.mxu0 0.0
    %697 = vmatpush1.msra.mxu0 0.0
    %698 = vmatprep.subr.mxu0 0.0
    %699 = vmatpush1.msra.mxu0 0.0
    %700 = vmatprep.subr.mxu0 0.0
    %701 = vmatpush1.msra.mxu0 0.0
    %702 = vmatprep.subr.mxu0 0.0
    %703 = vmatpush1.msra.mxu0 0.0
    %704 = vmatprep.subr.mxu0 0.0
    %705 = vmatpush1.msra.mxu0 0.0
    %706 = vmatprep.subr.mxu0 0.0
    %707 = vmatpush1.msra.mxu0 0.0
    %708 = vmatprep.subr.mxu0 0.0
    %709 = vmatpush1.msra.mxu0 0.0
    %710 = vmatprep.subr.mxu0 0.0
    %711 = vmatpush1.msra.mxu0 0.0
    %712 = vmatprep.subr.mxu0 0.0
    %713 = vmatpush1.msra.mxu0 0.0
    %714 = vmatprep.subr.mxu0 0.0
    %715 = vmatpush1.msra.mxu0 0.0
    %716 = vmatprep.subr.mxu0 0.0
    %717 = vmatpush1.msra.mxu0 0.0
    %718 = vmatprep.mubr.f32.mxu0 0.0
    %719 = vmatmul.mubr.f32.gmra.mrb[0].mxu0 %v646
    %v720 = vpop.f32.mrb[0].mxu0
    %v721 = vadd.f32 %v637, %v720
    %v722 = vpop.f32.mrb[0].mxu0
    %723 = vmatprep.mubr.f32.mxu0 0.0
    %724 = vmatmul.mubr.f32.gmra.mrb[0].mxu0 %v649
    %v725 = vpop.f32.mrb[0].mxu0
    %v726 = vadd.f32 %v642, %v725
    %v727 = vpop.f32.mrb[0].mxu0
    %728 = vdwg.mxu0
    %v729 = vld [vmem:[%s0 + $0x110] sm:$0x1]
    %v730 = vlaneseq
    %v731 = vshrl.u32 %v730, 7
    %v732 = vsub.s32 0, %v731
    %v733 = vrot.slane %v729, %v732
    %v734 = vadd.f32 %v721, %v733
    %v735 = vadd.f32 %v726, %v733
    %v736 = vmax.f32 %v734, 0.0
    %v737 = vmax.f32 %v735, 0.0
    %v738 = vld [vmem:[%s0 + $0x118] sm:$0xff]
    %v739 = vld [vmem:[%s0 + $0x120] sm:$0xff]
    %v740 = vld [vmem:[%s0 + $0x128] sm:$0xff]
    %v741 = vld [vmem:[%s0 + $0x130] sm:$0xff]
    %v742 = vld [vmem:[%s0 + $0x138] sm:$0xff]
    %v743 = vld [vmem:[%s0 + $0x140] sm:$0xff]
    %v744 = vld [vmem:[%s0 + $0x148] sm:$0xff]
    %v745 = vld [vmem:[%s0 + $0x150] sm:$0xff]
    %v746 = vld [vmem:[%s0 + $0x158] sm:$0x1]
    %v747 = vlaneseq
    %v748 = vshrl.u32 %v747, 7
    %v749 = vsub.s32 0, %v748
    %v750 = vrot.slane %v746, %v749
    %v752 = vsel %vm130, %v736, 0
    %v755 = vsel %vm130, %v737, 0
    %757 = vmatprep.subr.mxu0 0.0
    %758 = vmatpush1.msra.mxu0 %v738
    %759 = vmatprep.subr.mxu0 0.0
    %760 = vmatpush1.msra.mxu0 %v739
    %761 = vmatprep.subr.mxu0 0.0
    %762 = vmatpush1.msra.mxu0 %v740
    %763 = vmatprep.subr.mxu0 0.0
    %764 = vmatpush1.msra.mxu0 %v741
    %765 = vmatprep.subr.mxu0 0.0
    %766 = vmatpush1.msra.mxu0 %v742
    %767 = vmatprep.subr.mxu0 0.0
    %768 = vmatpush1.msra.mxu0 %v743
    %769 = vmatprep.subr.mxu0 0.0
    %770 = vmatpush1.msra.mxu0 %v744
    %771 = vmatprep.subr.mxu0 0.0
    %772 = vmatpush1.msra.mxu0 %v745
    %773 = vmatprep.subr.mxu0 0.0
    %774 = vmatpush1.msra.mxu0 0.0
    %775 = vmatprep.subr.mxu0 0.0
    %776 = vmatpush1.msra.mxu0 0.0
    %777 = vmatprep.subr.mxu0 0.0
    %778 = vmatpush1.msra.mxu0 0.0
    %779 = vmatprep.subr.mxu0 0.0
    %780 = vmatpush1.msra.mxu0 0.0
    %781 = vmatprep.subr.mxu0 0.0
    %782 = vmatpush1.msra.mxu0 0.0
    %783 = vmatprep.subr.mxu0 0.0
    %784 = vmatpush1.msra.mxu0 0.0
    %785 = vmatprep.subr.mxu0 0.0
    %786 = vmatpush1.msra.mxu0 0.0
    %787 = vmatprep.subr.mxu0 0.0
    %788 = vmatpush1.msra.mxu0 0.0
    %789 = vmatprep.subr.mxu0 0.0
    %790 = vmatpush1.msra.mxu0 0.0
    %791 = vmatprep.subr.mxu0 0.0
    %792 = vmatpush1.msra.mxu0 0.0
    %793 = vmatprep.subr.mxu0 0.0
    %794 = vmatpush1.msra.mxu0 0.0
    %795 = vmatprep.subr.mxu0 0.0
    %796 = vmatpush1.msra.mxu0 0.0
    %797 = vmatprep.subr.mxu0 0.0
    %798 = vmatpush1.msra.mxu0 0.0
    %799 = vmatprep.subr.mxu0 0.0
    %800 = vmatpush1.msra.mxu0 0.0
    %801 = vmatprep.subr.mxu0 0.0
    %802 = vmatpush1.msra.mxu0 0.0
    %803 = vmatprep.subr.mxu0 0.0
    %804 = vmatpush1.msra.mxu0 0.0
    %805 = vmatprep.subr.mxu0 0.0
    %806 = vmatpush1.msra.mxu0 0.0
    %807 = vmatprep.subr.mxu0 0.0
    %808 = vmatpush1.msra.mxu0 0.0
    %809 = vmatprep.subr.mxu0 0.0
    %810 = vmatpush1.msra.mxu0 0.0
    %811 = vmatprep.subr.mxu0 0.0
    %812 = vmatpush1.msra.mxu0 0.0
    %813 = vmatprep.subr.mxu0 0.0
    %814 = vmatpush1.msra.mxu0 0.0
    %815 = vmatprep.subr.mxu0 0.0
    %816 = vmatpush1.msra.mxu0 0.0
    %817 = vmatprep.subr.mxu0 0.0
    %818 = vmatpush1.msra.mxu0 0.0
    %819 = vmatprep.subr.mxu0 0.0
    %820 = vmatpush1.msra.mxu0 0.0
    %821 = vmatprep.mubr.f32.mxu0 0.0
    %822 = vmatmul.mubr.f32.gmra.mrb[0].mxu0 %v752
    %v823 = vpop.f32.mrb[0].mxu0
    %v824 = vadd.f32 %v750, %v823
    %v825 = vpop.f32.mrb[0].mxu0
    %826 = vmatprep.mubr.f32.mxu0 0.0
    %827 = vmatmul.mubr.f32.gmra.mrb[0].mxu0 %v755
    %v828 = vpop.f32.mrb[0].mxu0
    %v829 = vadd.f32 %v750, %v828
    %v830 = vpop.f32.mrb[0].mxu0
    %831 = vdwg.mxu0
    %v832 = vmax.f32 %v824, 0.0
    %v833 = vmax.f32 %v829, 0.0
    %v834 = vld [vmem:[%s0 + $0x160] sm:$0xff]
    %v835 = vld [vmem:[%s0 + $0x168] sm:$0xff]
    %v836 = vld [vmem:[%s0 + $0x170] sm:$0xff]
    %v837 = vld [vmem:[%s0 + $0x178] sm:$0xff]
    %v838 = vld [vmem:[%s0 + $0x180] sm:$0xff]
    %v839 = vld [vmem:[%s0 + $0x188] sm:$0xff]
    %v840 = vld [vmem:[%s0 + $0x190] sm:$0xff]
    %v841 = vld [vmem:[%s0 + $0x198] sm:$0xff]
    %v842 = vld [vmem:[%s0 + $0x1a0] sm:$0x1]
    %v843 = vlaneseq
    %v844 = vshrl.u32 %v843, 7
    %v845 = vsub.s32 0, %v844
    %v846 = vrot.slane %v842, %v845
    %v848 = vsel %vm130, %v832, 0
    %v851 = vsel %vm130, %v833, 0
    %853 = vmatprep.subr.mxu0 0.0
    %854 = vmatpush1.msra.mxu0 %v834
    %855 = vmatprep.subr.mxu0 0.0
    %856 = vmatpush1.msra.mxu0 %v835
    %857 = vmatprep.subr.mxu0 0.0
    %858 = vmatpush1.msra.mxu0 %v836
    %859 = vmatprep.subr.mxu0 0.0
    %860 = vmatpush1.msra.mxu0 %v837
    %861 = vmatprep.subr.mxu0 0.0
    %862 = vmatpush1.msra.mxu0 %v838
    %863 = vmatprep.subr.mxu0 0.0
    %864 = vmatpush1.msra.mxu0 %v839
    %865 = vmatprep.subr.mxu0 0.0
    %866 = vmatpush1.msra.mxu0 %v840
    %867 = vmatprep.subr.mxu0 0.0
    %868 = vmatpush1.msra.mxu0 %v841
    %869 = vmatprep.subr.mxu0 0.0
    %870 = vmatpush1.msra.mxu0 0.0
    %871 = vmatprep.subr.mxu0 0.0
    %872 = vmatpush1.msra.mxu0 0.0
    %873 = vmatprep.subr.mxu0 0.0
    %874 = vmatpush1.msra.mxu0 0.0
    %875 = vmatprep.subr.mxu0 0.0
    %876 = vmatpush1.msra.mxu0 0.0
    %877 = vmatprep.subr.mxu0 0.0
    %878 = vmatpush1.msra.mxu0 0.0
    %879 = vmatprep.subr.mxu0 0.0
    %880 = vmatpush1.msra.mxu0 0.0
    %881 = vmatprep.subr.mxu0 0.0
    %882 = vmatpush1.msra.mxu0 0.0
    %883 = vmatprep.subr.mxu0 0.0
    %884 = vmatpush1.msra.mxu0 0.0
    %885 = vmatprep.subr.mxu0 0.0
    %886 = vmatpush1.msra.mxu0 0.0
    %887 = vmatprep.subr.mxu0 0.0
    %888 = vmatpush1.msra.mxu0 0.0
    %889 = vmatprep.subr.mxu0 0.0
    %890 = vmatpush1.msra.mxu0 0.0
    %891 = vmatprep.subr.mxu0 0.0
    %892 = vmatpush1.msra.mxu0 0.0
    %893 = vmatprep.subr.mxu0 0.0
    %894 = vmatpush1.msra.mxu0 0.0
    %895 = vmatprep.subr.mxu0 0.0
    %896 = vmatpush1.msra.mxu0 0.0
    %897 = vmatprep.subr.mxu0 0.0
    %898 = vmatpush1.msra.mxu0 0.0
    %899 = vmatprep.subr.mxu0 0.0
    %900 = vmatpush1.msra.mxu0 0.0
    %901 = vmatprep.subr.mxu0 0.0
    %902 = vmatpush1.msra.mxu0 0.0
    %903 = vmatprep.subr.mxu0 0.0
    %904 = vmatpush1.msra.mxu0 0.0
    %905 = vmatprep.subr.mxu0 0.0
    %906 = vmatpush1.msra.mxu0 0.0
    %907 = vmatprep.subr.mxu0 0.0
    %908 = vmatpush1.msra.mxu0 0.0
    %909 = vmatprep.subr.mxu0 0.0
    %910 = vmatpush1.msra.mxu0 0.0
    %911 = vmatprep.subr.mxu0 0.0
    %912 = vmatpush1.msra.mxu0 0.0
    %913 = vmatprep.subr.mxu0 0.0
    %914 = vmatpush1.msra.mxu0 0.0
    %915 = vmatprep.subr.mxu0 0.0
    %916 = vmatpush1.msra.mxu0 0.0
    %917 = vmatprep.mubr.f32.mxu0 0.0
    %918 = vmatmul.mubr.f32.gmra.mrb[0].mxu0 %v848
    %v919 = vpop.f32.mrb[0].mxu0
    %v920 = vadd.f32 %v846, %v919
    %v921 = vpop.f32.mrb[0].mxu0
    %922 = vmatprep.mubr.f32.mxu0 0.0
    %923 = vmatmul.mubr.f32.gmra.mrb[0].mxu0 %v851
    %v924 = vpop.f32.mrb[0].mxu0
    %v925 = vadd.f32 %v846, %v924
    %v926 = vpop.f32.mrb[0].mxu0
    %927 = vdwg.mxu0
    %v928 = vmax.f32 %v920, 0.0
    %v929 = vmax.f32 %v925, 0.0
    %v930 = vld [vmem:[%s0 + $0x1a8] sm:$0xff]
    %v931 = vld [vmem:[%s0 + $0x1b0] sm:$0xff]
    %v932 = vld [vmem:[%s0 + $0x1b8] sm:$0xff]
    %v933 = vld [vmem:[%s0 + $0x1c0] sm:$0xff]
    %v934 = vld [vmem:[%s0 + $0x1c8] sm:$0xff]
    %v935 = vld [vmem:[%s0 + $0x1d0] sm:$0xff]
    %v936 = vld [vmem:[%s0 + $0x1d8] sm:$0xff]
    %v937 = vld [vmem:[%s0 + $0x1e0] sm:$0xff]
    %v938 = vld [vmem:[%s0 + $0x1e8] sm:$0x1]
    %v939 = vlaneseq
    %v940 = vshrl.u32 %v939, 7
    %v941 = vsub.s32 0, %v940
    %v942 = vrot.slane %v938, %v941
    %v944 = vsel %vm130, %v928, 0
    %v947 = vsel %vm130, %v929, 0
    %949 = vmatprep.subr.mxu0 0.0
    %950 = vmatpush1.msra.mxu0 %v930
    %951 = vmatprep.subr.mxu0 0.0
    %952 = vmatpush1.msra.mxu0 %v931
    %953 = vmatprep.subr.mxu0 0.0
    %954 = vmatpush1.msra.mxu0 %v932
    %955 = vmatprep.subr.mxu0 0.0
    %956 = vmatpush1.msra.mxu0 %v933
    %957 = vmatprep.subr.mxu0 0.0
    %958 = vmatpush1.msra.mxu0 %v934
    %959 = vmatprep.subr.mxu0 0.0
    %960 = vmatpush1.msra.mxu0 %v935
    %961 = vmatprep.subr.mxu0 0.0
    %962 = vmatpush1.msra.mxu0 %v936
    %963 = vmatprep.subr.mxu0 0.0
    %964 = vmatpush1.msra.mxu0 %v937
    %965 = vmatprep.subr.mxu0 0.0
    %966 = vmatpush1.msra.mxu0 0.0
    %967 = vmatprep.subr.mxu0 0.0
    %968 = vmatpush1.msra.mxu0 0.0
    %969 = vmatprep.subr.mxu0 0.0
    %970 = vmatpush1.msra.mxu0 0.0
    %971 = vmatprep.subr.mxu0 0.0
    %972 = vmatpush1.msra.mxu0 0.0
    %973 = vmatprep.subr.mxu0 0.0
    %974 = vmatpush1.msra.mxu0 0.0
    %975 = vmatprep.subr.mxu0 0.0
    %976 = vmatpush1.msra.mxu0 0.0
    %977 = vmatprep.subr.mxu0 0.0
    %978 = vmatpush1.msra.mxu0 0.0
    %979 = vmatprep.subr.mxu0 0.0
    %980 = vmatpush1.msra.mxu0 0.0
    %981 = vmatprep.subr.mxu0 0.0
    %982 = vmatpush1.msra.mxu0 0.0
    %983 = vmatprep.subr.mxu0 0.0
    %984 = vmatpush1.msra.mxu0 0.0
    %985 = vmatprep.subr.mxu0 0.0
    %986 = vmatpush1.msra.mxu0 0.0
    %987 = vmatprep.subr.mxu0 0.0
    %988 = vmatpush1.msra.mxu0 0.0
    %989 = vmatprep.subr.mxu0 0.0
    %990 = vmatpush1.msra.mxu0 0.0
    %991 = vmatprep.subr.mxu0 0.0
    %992 = vmatpush1.msra.mxu0 0.0
    %993 = vmatprep.subr.mxu0 0.0
    %994 = vmatpush1.msra.mxu0 0.0
    %995 = vmatprep.subr.mxu0 0.0
    %996 = vmatpush1.msra.mxu0 0.0
    %997 = vmatprep.subr.mxu0 0.0
    %998 = vmatpush1.msra.mxu0 0.0
    %999 = vmatprep.subr.mxu0 0.0
    %1000 = vmatpush1.msra.mxu0 0.0
    %1001 = vmatprep.subr.mxu0 0.0
    %1002 = vmatpush1.msra.mxu0 0.0
    %1003 = vmatprep.subr.mxu0 0.0
    %1004 = vmatpush1.msra.mxu0 0.0
    %1005 = vmatprep.subr.mxu0 0.0
    %1006 = vmatpush1.msra.mxu0 0.0
    %1007 = vmatprep.subr.mxu0 0.0
    %1008 = vmatpush1.msra.mxu0 0.0
    %1009 = vmatprep.subr.mxu0 0.0
    %1010 = vmatpush1.msra.mxu0 0.0
    %1011 = vmatprep.subr.mxu0 0.0
    %1012 = vmatpush1.msra.mxu0 0.0
    %1013 = vmatprep.mubr.f32.mxu0 0.0
    %1014 = vmatmul.mubr.f32.gmra.mrb[0].mxu0 %v944
    %v1015 = vpop.f32.mrb[0].mxu0
    %v1016 = vadd.f32 %v942, %v1015
    %v1017 = vpop.f32.mrb[0].mxu0
    %1018 = vmatprep.mubr.f32.mxu0 0.0
    %1019 = vmatmul.mubr.f32.gmra.mrb[0].mxu0 %v947
    %v1020 = vpop.f32.mrb[0].mxu0
    %v1021 = vadd.f32 %v942, %v1020
    %v1022 = vpop.f32.mrb[0].mxu0
    %1023 = vdwg.mxu0
    %v1024 = vlaneseq
    %v1025 = vand.u32 %v1024, 127
    %vm1026 = vcmp.lt.s32.totalorder %v1025, 2
    %v1027 = vxor.u32 %v1016, 2147483648
    %v1028 = vxor.u32 %v1021, 2147483648
    %v1029 = vmul.f32 %v1027, 1.442695
    %v1030 = vpow.pop %v1029
    %v1031 = vmul.f32 %v1028, 1.442695
    %v1032 = vpow.pop %v1031
    %v1033 = vadd.f32 %v1030, 1.0
    %v1034 = vadd.f32 %v1032, 1.0
    %v1035 = vrcp.pop %v1033
    %v1036 = vmul.f32 1.0, %v1035
    %v1037 = vrcp.pop %v1034
    %v1038 = vmul.f32 1.0, %v1037
    %v1039 = vmax.f32 %v1016, 0.0
    %v1040 = vmax.f32 %v1021, 0.0
    %vm1041 = vcmp.ne.f32.partialorder %v1016, %v1016
    %vm1042 = vcmp.ne.f32.partialorder %v1021, %v1021
    %v1043 = vadd.f32 %v1016, 0.0
    %v1044 = vadd.f32 %v1021, 0.0
    %v1045 = vand.u32 2147483647, %v1016
    %v1046 = vand.u32 2147483647, %v1021
    %v1047 = vsub.f32 0.0, %v1045
    %v1048 = vsub.f32 0.0, %v1046
    %v1049 = vmul.f32 %v1047, 1.442695
    %v1050 = vpow.pop %v1049
    %v1051 = vmul.f32 %v1048, 1.442695
    %v1052 = vpow.pop %v1051
    %v1053 = vadd.f32 %v1050, 1.0
    %v1054 = vlog2.pop %v1053
    %v1055 = vmul.f32 %v1054, 0.6931472
    %v1056 = vmul.f32 -0.5, %v1050
    %v1057 = vadd.f32 %v1056, 1.0
    %v1058 = vmul.f32 %v1057, %v1050
    %v1059 = vand.u32 2147483647, %v1050
    %vm1060 = vcmp.lt.f32.partialorder %v1059, 0.0004427343
    %v1061 = vsel %vm1060, %v1058, %v1055
    %v1062 = vadd.f32 %v1052, 1.0
    %v1063 = vlog2.pop %v1062
    %v1064 = vmul.f32 %v1063, 0.6931472
    %v1065 = vmul.f32 -0.5, %v1052
    %v1066 = vadd.f32 %v1065, 1.0
    %v1067 = vmul.f32 %v1066, %v1052
    %v1068 = vand.u32 2147483647, %v1052
    %vm1069 = vcmp.lt.f32.partialorder %v1068, 0.0004427343
    %v1070 = vsel %vm1069, %v1067, %v1064
    %v1071 = vadd.f32 %v1039, %v1061
    %v1072 = vadd.f32 %v1040, %v1070
    %v1073 = vsel %vm1041, %v1043, %v1071
    %v1074 = vsel %vm1042, %v1044, %v1072
    %v1075 = vsel %vm1026, %v1036, %v1073
    %v1076 = vsel %vm1026, %v1038, %v1074
    %vm1077 = vcmask 31744
    %1078 = vst.msk [vmem:[%s3] sm:$0xff] %vm1077, %v1075
    %1079 = vst.msk [vmem:[%s3 + $0x8] sm:$0xff] %vm1077, %v1076
    // Predicated region
    $region10: #{tpu_custom_call.1} parent=1 // pred_check
      _
    $region11: #{tpu_custom_call.1} parent=1 // pred_check_branch
      %1081 = sbr.rel (0) target = $region13
    $region12: #{tpu_custom_call.1} parent=1 // pred_region
      %s1083 = ssub.s32 32, 32
      %1084 = vsyncadd [#allocation3], %s1083
      %s1086 = sshll.u32 [#allocation2], 4
      %s1087 = int_to_ptr.vmem [resolvable:$true] %s1086
      %1089 = dma.vmem_to_hbm [thread:$0]  %s1087, 32, %s2, [#allocation3]
    $region13: #{tpu_custom_call.1} parent=1 // pred_fallthru
      _
    // Predicated region
    $region14: #{tpu_custom_call.1} parent=1 // pred_check
      _
    $region15: #{tpu_custom_call.1} parent=1 // pred_check_branch
      %1091 = sbr.rel (0) target = $region17
    $region16: #{tpu_custom_call.1} parent=1 // pred_region
      _
    $region17: #{tpu_custom_call.1} parent=1 // pred_fallthru
      _
    // Predicated region
    $region18: #{tpu_custom_call.1} parent=1 // pred_check
      _
    $region19: #{tpu_custom_call.1} parent=1 // pred_check_branch
      %1093 = sbr.rel (0) target = $region21
    $region20: #{tpu_custom_call.1} parent=1 // pred_region
      %1094 = dma.done [#allocation3], 32
    $region21: #{tpu_custom_call.1} parent=1 // pred_fallthru
      _
    // Predicated region
    $region22: #{tpu_custom_call.1} parent=1 // pred_check
      _
    $region23: #{tpu_custom_call.1} parent=1 // pred_check_branch
      %1096 = sbr.rel (0) target = $region25
    $region24: #{tpu_custom_call.1} parent=1 // pred_region
      _
    $region25: #{tpu_custom_call.1} parent=1 // pred_fallthru
      _
    %1097 = vsyncpa [#allocation3], 1

</llo_original>
